<compile_context>
chip_gen: v5e
topology: v5e:2x2
jax: 0.10.0
libtpu: 0.0.40
codegen_flags: <defaults>
</compile_context>

<pallas_src>
import functools

import jax
import jax.numpy as jnp
from jax.experimental import pallas as pl
from jax.experimental.pallas import tpu as pltpu


def resblock_kernel(x_ref, w_ref, b_ref, o_ref, *, H, W):
    # x_ref: (Bt, C, H*W)  flattened NCHW images
    # w_ref: (9, C, C)     per-tap (C_out, C_in) matrices, tap = ky*3 + kx
    # b_ref: (C, 1)        bias (broadcasts along the lane axis)
    # o_ref: (Bt, C, H*W)  output block (channel-major, lane-dense)
    Bt, C, HW = x_ref.shape
    f32 = jnp.float32

    # Lane-aligned zero halo for the flattened spatial axis: every tap shift is
    # then a static lane-slice of [0 | x | 0]; vertical out-of-range reads land
    # in the zero blocks, so only the two horizontal row-wrap masks remain.
    pad = ((W + 1 + 127) // 128) * 128          # multiple of 128 -> aligned concat

    # Row-wrap masks: grid-/image-invariant, built ONCE (outside the Bt loop).
    # w_idx is derived without vector integer div/mod (exact float trick).
    p = jax.lax.broadcasted_iota(jnp.int32, (C, HW), 1)
    h_idx = jnp.floor((p.astype(f32) + 0.5) * (1.0 / W)).astype(jnp.int32)
    w_idx = p - h_idx * W
    ok_left = w_idx >= 1                        # taps shifted by ox = -1
    ok_right = w_idx <= W - 2                   # taps shifted by ox = +1

    # Hoisted constants (JAX does not CSE broadcasts inside loops).
    bias_full = jnp.broadcast_to(b_ref[...].astype(f32), (C, HW))
    zeros_halo = jnp.zeros((C, pad), dtype=x_ref.dtype)

    for img in range(Bt):                       # Bt is small & static -> unrolled
        x_img = x_ref[img]                      # (C, HW), input dtype
        x_ext = jnp.concatenate([zeros_halo, x_img, zeros_halo], axis=1)

        acc = bias_full                         # f32 accumulator, bias folded in
        for ky in range(3):
            for kx in range(3):
                oy, ox = ky - 1, kx - 1
                if oy == 0 and ox == 0:
                    x_tap = x_img               # centre tap: the image itself
                else:
                    start = pad + oy * W + ox
                    x_tap = x_ext[:, start:start + HW]
                    if ox == -1:
                        x_tap = jnp.where(ok_left, x_tap, 0)
                    elif ox == 1:
                        x_tap = jnp.where(ok_right, x_tap, 0)
                # (C,C) @ (C,HW) -> (C,HW): channel-major, lane-dense result.
                acc = acc + jnp.dot(w_ref[ky * 3 + kx], x_tap,
                                    preferred_element_type=f32)

        act = jnp.maximum(acc, 0.0)             # ReLU (bias already included)
        # Residual reuses the un-shifted image; lane-dense f32 epilogue.
        o_ref[img] = (x_img.astype(f32) + act).astype(o_ref.dtype)


def _pick_batch_tile(n, per_image_bytes, target_bytes=1 << 20):
    """Largest divisor of n with block <= ~target, keeping >= 2 grid steps."""
    cap = max(1, target_bytes // max(per_image_bytes, 1))
    if n >= 2:
        cap = min(cap, n // 2)    # >= 2 parallel steps (v7x: 2 TensorCores)
    cap = min(cap, n)
    bt = 1
    for d in range(1, cap + 1):
        if n % d == 0:
            bt = d
    return bt


def resblock_forward(x_nchw, w_oihw, bias, *, batch_tile=None):
    """x_nchw: (N, C, H, W); w_oihw: (C, C, 3, 3); bias: (C,)."""
    N, C, H, W = x_nchw.shape
    HW = H * W

    # Layout plumbing is all free reshapes / tiny weight transforms:
    #  - NCHW -> (N, C, H*W): contiguous reshape, no HBM transpose, no pad copy,
    #  - weights (co, ci, kh, kw) -> (kh, kw, co, ci) -> (9, C, C) tap matrices,
    #  - bias -> (C, 1) so it broadcasts along lanes in the (C, H*W) layout.
    x_flat = x_nchw.reshape(N, C, HW)
    wk = jnp.transpose(w_oihw, (2, 3, 0, 1)).reshape(9, C, C)
    bk = bias.reshape(C, 1)

    per_image_bytes = C * HW * x_flat.dtype.itemsize
    bt = batch_tile if batch_tile is not None else _pick_batch_tile(
        N, per_image_bytes)
    assert N % bt == 0
    grid = (N // bt,)

    block_bytes = bt * per_image_bytes
    # Explicit VMEM budget: 2x double-buffered in/out blocks + weights/bias +
    # f32 temps, with headroom.  Tiny here; matters when Bt/H/W/C grow (v7x).
    vmem_limit = int(min(32 * 1024 * 1024, max(4 * 1024 * 1024, 8 * block_bytes)))

    out_flat = pl.pallas_call(
        functools.partial(resblock_kernel, H=H, W=W),
        out_shape=jax.ShapeDtypeStruct((N, C, HW), x_nchw.dtype),
        grid_spec=pltpu.PrefetchScalarGridSpec(
            num_scalar_prefetch=0,
            grid=grid,
            in_specs=[
                pl.BlockSpec((bt, C, HW), lambda n: (n, 0, 0)),
                pl.BlockSpec((9, C, C), lambda n: (0, 0, 0)),
                pl.BlockSpec((C, 1), lambda n: (0, 0)),
            ],
            out_specs=pl.BlockSpec((bt, C, HW), lambda n: (n, 0, 0)),
        ),
        compiler_params=pltpu.CompilerParams(
            dimension_semantics=("parallel",),
            vmem_limit_bytes=vmem_limit),
    )(x_flat, wk, bk)

    return out_flat.reshape(N, C, H, W)


def resblock_reference(x_nchw, w_oihw, bias):
    conv = jax.lax.conv_general_dilated(
        x_nchw, w_oihw, window_strides=(1, 1), padding=((1, 1), (1, 1)),
        dimension_numbers=("NCHW", "OIHW", "NCHW"))
    conv = conv + bias.reshape(1, -1, 1, 1)
    return x_nchw + jnp.maximum(conv, 0.0)


if __name__ == "__main__":
    key = jax.random.PRNGKey(0)
    k_x, k_w, k_b = jax.random.split(key, 3)

    N, C, H, W = 2, 4, 16, 16
    x = jax.random.normal(k_x, (N, C, H, W), dtype=jnp.float32)
    # deterministic synthetic Conv2d(n_chan, n_chan, 3, 1, 1) params
    w = jax.random.normal(k_w, (C, C, 3, 3), dtype=jnp.float32) * 0.1
    b = jax.random.normal(k_b, (C,), dtype=jnp.float32) * 0.1

    y = resblock_forward(x, w, b)
    y = jax.block_until_ready(y)

    y_ref = resblock_reference(x, w, b)
    assert y.shape == (N, C, H, W)
    assert jnp.allclose(y, y_ref, atol=1e-5, rtol=1e-5)
    print("KERNEL_OK")
</pallas_src>

<mosaic_0001>
module attributes {stable_mosaic.version = 11 : i64} {
  func.func @resblock_kernel(%arg0: i32, %arg1: memref<1x4x256xf32, #tpu.memory_space<vmem>>, %arg2: memref<9x4x4xf32, #tpu.memory_space<vmem>>, %arg3: memref<4x1xf32, #tpu.memory_space<vmem>>, %arg4: memref<1x4x256xf32, #tpu.memory_space<vmem>>) attributes {dimension_semantics = [#tpu.dimension_semantics<parallel>], iteration_bounds = array<i64: 2>, scalar_prefetch = 0 : i64, scratch_operands = 0 : i64, tpu.core_type = #tpu.core_type<tc>, window_params = [{transform_indices = @transform_0, window_bounds = array<i64: 1, 4, 256>}, {pipeline_mode = #tpu.pipeline_mode<synchronous>, transform_indices = @transform_1, window_bounds = array<i64: 9, 4, 4>}, {pipeline_mode = #tpu.pipeline_mode<synchronous>, transform_indices = @transform_2, window_bounds = array<i64: 4, 1>}, {transform_indices = @transform_3, window_bounds = array<i64: 1, 4, 256>}]} {
    %0 = tpu.iota {dimensions = array<i32: 1>} : vector<4x256xi32>
    %1 = arith.sitofp %0 : vector<4x256xi32> to vector<4x256xf32>
    %cst = arith.constant 5.000000e-01 : f32
    %2 = vector.broadcast %cst : f32 to vector<4x256xf32>
    %3 = arith.addf %1, %2 : vector<4x256xf32>
    %cst_0 = arith.constant 6.250000e-02 : f32
    %4 = vector.broadcast %cst_0 : f32 to vector<4x256xf32>
    %5 = arith.mulf %3, %4 : vector<4x256xf32>
    %6 = math.floor %5 : vector<4x256xf32>
    %7 = arith.fptosi %6 : vector<4x256xf32> to vector<4x256xi32>
    %c16_i32 = arith.constant 16 : i32
    %8 = vector.broadcast %c16_i32 : i32 to vector<4x256xi32>
    %9 = arith.muli %7, %8 : vector<4x256xi32>
    %10 = arith.subi %0, %9 : vector<4x256xi32>
    %c1_i32 = arith.constant 1 : i32
    %11 = vector.broadcast %c1_i32 : i32 to vector<4x256xi32>
    %12 = arith.cmpi sge, %10, %11 : vector<4x256xi32>
    %c14_i32 = arith.constant 14 : i32
    %13 = vector.broadcast %c14_i32 : i32 to vector<4x256xi32>
    %14 = arith.cmpi sle, %10, %13 : vector<4x256xi32>
    %c0 = arith.constant 0 : index
    %c0_1 = arith.constant 0 : index
    %15 = vector.load %arg3[%c0, %c0_1] : memref<4x1xf32, #tpu.memory_space<vmem>>, vector<4x1xf32>
    %16 = vector.shape_cast %15 : vector<4x1xf32> to vector<4x1xf32>
    %17 = vector.broadcast %16 : vector<4x1xf32> to vector<4x256xf32>
    %cst_2 = arith.constant 0.000000e+00 : f32
    %18 = vector.broadcast %cst_2 : f32 to vector<4x128xf32>
    %c0_3 = arith.constant 0 : index
    %c0_4 = arith.constant 0 : index
    %c0_5 = arith.constant 0 : index
    %19 = vector.load %arg1[%c0_3, %c0_4, %c0_5] : memref<1x4x256xf32, #tpu.memory_space<vmem>>, vector<1x4x256xf32>
    %20 = vector.shape_cast %19 : vector<1x4x256xf32> to vector<4x256xf32>
    %21 = tpu.concatenate %18, %20, %18 in 1 : vector<4x128xf32>, vector<4x256xf32>, vector<4x128xf32> -> vector<4x512xf32>
    %22 = vector.extract_strided_slice %21 {offsets = [0, 111], sizes = [4, 256], strides = [1, 1]} : vector<4x512xf32> to vector<4x256xf32>
    %c0_i32 = arith.constant 0 : i32
    %23 = arith.sitofp %c0_i32 : i32 to f32
    %24 = vector.broadcast %23 : f32 to vector<4x256xf32>
    %25 = arith.select %12, %22, %24 : vector<4x256xi1>, vector<4x256xf32>
    %c0_6 = arith.constant 0 : index
    %c0_7 = arith.constant 0 : index
    %c0_8 = arith.constant 0 : index
    %26 = vector.load %arg2[%c0_6, %c0_7, %c0_8] : memref<9x4x4xf32, #tpu.memory_space<vmem>>, vector<1x4x4xf32>
    %27 = vector.shape_cast %26 : vector<1x4x4xf32> to vector<4x4xf32>
    %cst_9 = arith.constant dense<0.000000e+00> : vector<4x256xf32>
    %28 = tpu.matmul %27, %25, %cst_9 {dimension_numbers = #tpu.dot_dimension_numbers<[1], [0], [0], [1], [0, 0, 1, 1], [], []>} : vector<4x4xf32>, vector<4x256xf32>, vector<4x256xf32> -> vector<4x256xf32>
    %29 = arith.addf %17, %28 : vector<4x256xf32>
    %30 = vector.extract_strided_slice %21 {offsets = [0, 112], sizes = [4, 256], strides = [1, 1]} : vector<4x512xf32> to vector<4x256xf32>
    %c1 = arith.constant 1 : index
    %c0_10 = arith.constant 0 : index
    %c0_11 = arith.constant 0 : index
    %31 = vector.load %arg2[%c1, %c0_10, %c0_11] : memref<9x4x4xf32, #tpu.memory_space<vmem>>, vector<1x4x4xf32>
    %32 = vector.shape_cast %31 : vector<1x4x4xf32> to vector<4x4xf32>
    %cst_12 = arith.constant dense<0.000000e+00> : vector<4x256xf32>
    %33 = tpu.matmul %32, %30, %cst_12 {dimension_numbers = #tpu.dot_dimension_numbers<[1], [0], [0], [1], [0, 0, 1, 1], [], []>} : vector<4x4xf32>, vector<4x256xf32>, vector<4x256xf32> -> vector<4x256xf32>
    %34 = arith.addf %29, %33 : vector<4x256xf32>
    %35 = vector.extract_strided_slice %21 {offsets = [0, 113], sizes = [4, 256], strides = [1, 1]} : vector<4x512xf32> to vector<4x256xf32>
    %c0_i32_13 = arith.constant 0 : i32
    %36 = arith.sitofp %c0_i32_13 : i32 to f32
    %37 = vector.broadcast %36 : f32 to vector<4x256xf32>
    %38 = arith.select %14, %35, %37 : vector<4x256xi1>, vector<4x256xf32>
    %c2 = arith.constant 2 : index
    %c0_14 = arith.constant 0 : index
    %c0_15 = arith.constant 0 : index
    %39 = vector.load %arg2[%c2, %c0_14, %c0_15] : memref<9x4x4xf32, #tpu.memory_space<vmem>>, vector<1x4x4xf32>
    %40 = vector.shape_cast %39 : vector<1x4x4xf32> to vector<4x4xf32>
    %cst_16 = arith.constant dense<0.000000e+00> : vector<4x256xf32>
    %41 = tpu.matmul %40, %38, %cst_16 {dimension_numbers = #tpu.dot_dimension_numbers<[1], [0], [0], [1], [0, 0, 1, 1], [], []>} : vector<4x4xf32>, vector<4x256xf32>, vector<4x256xf32> -> vector<4x256xf32>
    %42 = arith.addf %34, %41 : vector<4x256xf32>
    %43 = vector.extract_strided_slice %21 {offsets = [0, 127], sizes = [4, 256], strides = [1, 1]} : vector<4x512xf32> to vector<4x256xf32>
    %c0_i32_17 = arith.constant 0 : i32
    %44 = arith.sitofp %c0_i32_17 : i32 to f32
    %45 = vector.broadcast %44 : f32 to vector<4x256xf32>
    %46 = arith.select %12, %43, %45 : vector<4x256xi1>, vector<4x256xf32>
    %c3 = arith.constant 3 : index
    %c0_18 = arith.constant 0 : index
    %c0_19 = arith.constant 0 : index
    %47 = vector.load %arg2[%c3, %c0_18, %c0_19] : memref<9x4x4xf32, #tpu.memory_space<vmem>>, vector<1x4x4xf32>
    %48 = vector.shape_cast %47 : vector<1x4x4xf32> to vector<4x4xf32>
    %cst_20 = arith.constant dense<0.000000e+00> : vector<4x256xf32>
    %49 = tpu.matmul %48, %46, %cst_20 {dimension_numbers = #tpu.dot_dimension_numbers<[1], [0], [0], [1], [0, 0, 1, 1], [], []>} : vector<4x4xf32>, vector<4x256xf32>, vector<4x256xf32> -> vector<4x256xf32>
    %50 = arith.addf %42, %49 : vector<4x256xf32>
    %c4 = arith.constant 4 : index
    %c0_21 = arith.constant 0 : index
    %c0_22 = arith.constant 0 : index
    %51 = vector.load %arg2[%c4, %c0_21, %c0_22] : memref<9x4x4xf32, #tpu.memory_space<vmem>>, vector<1x4x4xf32>
    %52 = vector.shape_cast %51 : vector<1x4x4xf32> to vector<4x4xf32>
    %cst_23 = arith.constant dense<0.000000e+00> : vector<4x256xf32>
    %53 = tpu.matmul %52, %20, %cst_23 {dimension_numbers = #tpu.dot_dimension_numbers<[1], [0], [0], [1], [0, 0, 1, 1], [], []>} : vector<4x4xf32>, vector<4x256xf32>, vector<4x256xf32> -> vector<4x256xf32>
    %54 = arith.addf %50, %53 : vector<4x256xf32>
    %55 = vector.extract_strided_slice %21 {offsets = [0, 129], sizes = [4, 256], strides = [1, 1]} : vector<4x512xf32> to vector<4x256xf32>
    %c0_i32_24 = arith.constant 0 : i32
    %56 = arith.sitofp %c0_i32_24 : i32 to f32
    %57 = vector.broadcast %56 : f32 to vector<4x256xf32>
    %58 = arith.select %14, %55, %57 : vector<4x256xi1>, vector<4x256xf32>
    %c5 = arith.constant 5 : index
    %c0_25 = arith.constant 0 : index
    %c0_26 = arith.constant 0 : index
    %59 = vector.load %arg2[%c5, %c0_25, %c0_26] : memref<9x4x4xf32, #tpu.memory_space<vmem>>, vector<1x4x4xf32>
    %60 = vector.shape_cast %59 : vector<1x4x4xf32> to vector<4x4xf32>
    %cst_27 = arith.constant dense<0.000000e+00> : vector<4x256xf32>
    %61 = tpu.matmul %60, %58, %cst_27 {dimension_numbers = #tpu.dot_dimension_numbers<[1], [0], [0], [1], [0, 0, 1, 1], [], []>} : vector<4x4xf32>, vector<4x256xf32>, vector<4x256xf32> -> vector<4x256xf32>
    %62 = arith.addf %54, %61 : vector<4x256xf32>
    %63 = vector.extract_strided_slice %21 {offsets = [0, 143], sizes = [4, 256], strides = [1, 1]} : vector<4x512xf32> to vector<4x256xf32>
    %c0_i32_28 = arith.constant 0 : i32
    %64 = arith.sitofp %c0_i32_28 : i32 to f32
    %65 = vector.broadcast %64 : f32 to vector<4x256xf32>
    %66 = arith.select %12, %63, %65 : vector<4x256xi1>, vector<4x256xf32>
    %c6 = arith.constant 6 : index
    %c0_29 = arith.constant 0 : index
    %c0_30 = arith.constant 0 : index
    %67 = vector.load %arg2[%c6, %c0_29, %c0_30] : memref<9x4x4xf32, #tpu.memory_space<vmem>>, vector<1x4x4xf32>
    %68 = vector.shape_cast %67 : vector<1x4x4xf32> to vector<4x4xf32>
    %cst_31 = arith.constant dense<0.000000e+00> : vector<4x256xf32>
    %69 = tpu.matmul %68, %66, %cst_31 {dimension_numbers = #tpu.dot_dimension_numbers<[1], [0], [0], [1], [0, 0, 1, 1], [], []>} : vector<4x4xf32>, vector<4x256xf32>, vector<4x256xf32> -> vector<4x256xf32>
    %70 = arith.addf %62, %69 : vector<4x256xf32>
    %71 = vector.extract_strided_slice %21 {offsets = [0, 144], sizes = [4, 256], strides = [1, 1]} : vector<4x512xf32> to vector<4x256xf32>
    %c7 = arith.constant 7 : index
    %c0_32 = arith.constant 0 : index
    %c0_33 = arith.constant 0 : index
    %72 = vector.load %arg2[%c7, %c0_32, %c0_33] : memref<9x4x4xf32, #tpu.memory_space<vmem>>, vector<1x4x4xf32>
    %73 = vector.shape_cast %72 : vector<1x4x4xf32> to vector<4x4xf32>
    %cst_34 = arith.constant dense<0.000000e+00> : vector<4x256xf32>
    %74 = tpu.matmul %73, %71, %cst_34 {dimension_numbers = #tpu.dot_dimension_numbers<[1], [0], [0], [1], [0, 0, 1, 1], [], []>} : vector<4x4xf32>, vector<4x256xf32>, vector<4x256xf32> -> vector<4x256xf32>
    %75 = arith.addf %70, %74 : vector<4x256xf32>
    %76 = vector.extract_strided_slice %21 {offsets = [0, 145], sizes = [4, 256], strides = [1, 1]} : vector<4x512xf32> to vector<4x256xf32>
    %c0_i32_35 = arith.constant 0 : i32
    %77 = arith.sitofp %c0_i32_35 : i32 to f32
    %78 = vector.broadcast %77 : f32 to vector<4x256xf32>
    %79 = arith.select %14, %76, %78 : vector<4x256xi1>, vector<4x256xf32>
    %c8 = arith.constant 8 : index
    %c0_36 = arith.constant 0 : index
    %c0_37 = arith.constant 0 : index
    %80 = vector.load %arg2[%c8, %c0_36, %c0_37] : memref<9x4x4xf32, #tpu.memory_space<vmem>>, vector<1x4x4xf32>
    %81 = vector.shape_cast %80 : vector<1x4x4xf32> to vector<4x4xf32>
    %cst_38 = arith.constant dense<0.000000e+00> : vector<4x256xf32>
    %82 = tpu.matmul %81, %79, %cst_38 {dimension_numbers = #tpu.dot_dimension_numbers<[1], [0], [0], [1], [0, 0, 1, 1], [], []>} : vector<4x4xf32>, vector<4x256xf32>, vector<4x256xf32> -> vector<4x256xf32>
    %83 = arith.addf %75, %82 : vector<4x256xf32>
    %cst_39 = arith.constant 0.000000e+00 : f32
    %84 = vector.broadcast %cst_39 : f32 to vector<4x256xf32>
    %85 = arith.maximumf %83, %84 : vector<4x256xf32>
    %86 = arith.addf %20, %85 : vector<4x256xf32>
    %c0_40 = arith.constant 0 : index
    %c0_41 = arith.constant 0 : index
    %c0_42 = arith.constant 0 : index
    %87 = vector.load %arg4[%c0_40, %c0_41, %c0_42] : memref<1x4x256xf32, #tpu.memory_space<vmem>>, vector<1x4x256xf32>
    %88 = vector.shape_cast %87 : vector<1x4x256xf32> to vector<4x256xf32>
    %89 = vector.shape_cast %86 : vector<4x256xf32> to vector<1x4x256xf32>
    tpu.vector_store %arg4[%c0_40, %c0_41, %c0_42], %89 {strides = array<i32>} : memref<1x4x256xf32, #tpu.memory_space<vmem>>, vector<1x4x256xf32>,
    return
  }
  func.func @transform_0(%arg0: i32) -> (i32, i32, i32) {
    %c0_i32 = arith.constant 0 : i32
    %c0_i32_0 = arith.constant 0 : i32
    %c0_i32_1 = arith.constant 0 : i32
    return %arg0, %c0_i32, %c0_i32_0 : i32, i32, i32
  }
  func.func @transform_1(%arg0: i32) -> (i32, i32, i32) {
    %c0_i32 = arith.constant 0 : i32
    %c0_i32_0 = arith.constant 0 : i32
    %c0_i32_1 = arith.constant 0 : i32
    %c0_i32_2 = arith.constant 0 : i32
    return %c0_i32, %c0_i32_0, %c0_i32_1 : i32, i32, i32
  }
  func.func @transform_2(%arg0: i32) -> (i32, i32) {
    %c0_i32 = arith.constant 0 : i32
    %c0_i32_0 = arith.constant 0 : i32
    %c0_i32_1 = arith.constant 0 : i32
    return %c0_i32, %c0_i32_0 : i32, i32
  }
  func.func @transform_3(%arg0: i32) -> (i32, i32, i32) {
    %c0_i32 = arith.constant 0 : i32
    %c0_i32_0 = arith.constant 0 : i32
    %c0_i32_1 = arith.constant 0 : i32
    return %arg0, %c0_i32, %c0_i32_0 : i32, i32, i32
  }
}

</mosaic_0001>

<llo_original>
// kernel: tpu_custom_call.1
$region0: #{tpu_custom_call.1}
  #allocation0 [shape = 'u32[]', space=smem, size = 0x4, offset = 0x4, fixed_abs, tag = 'smem constant byte address 0x4 - core index']
  #allocation1 [shape = 'u32[72,128]{1,0:T(1,128)}', space=vmem, size = 0x9000, scoped, tag = 'internal scratch']
  %s0 = inlined_call_operand.vmem [shape: f32[2,4,256], index: 0, kind: input, shape index: {}]
  %s1 = inlined_call_operand.vmem [shape: f32[9,4,4], index: 1, kind: input, shape index: {}]
  %s2 = inlined_call_operand.vmem [shape: f32[4,1], index: 2, kind: input, shape index: {}]
  %s3 = inlined_call_operand.hbm [shape: f32[2,4,256], index: 3, kind: output, shape index: {}]
  %s4 = sld [smem:[#allocation0]]
  $region45: #{tpu_custom_call.1} parent=0
    _
  %s6 = ssub.s32 1, %s4
  %s7 = scalar_select 0, %s6, %s4
  $region1: #{tpu_custom_call.1} parent=0
    #allocation2 [shape = 'u8[8192]{0}', space=vmem, size = 0x2000, scoped, tag = 'output window, operand 0']
    #allocation3 [shape = 's32[2]{0}', space=sflag, size = 0x8, scoped, tag = 'scoped memory for tpu_custom_call.1']
    %8 = vsyncpa [#allocation3], 0
    %s9 = scalar_lea.sflag [#allocation3], 1
    %10 = vsyncpa %s9, 0
    loop: start=0, step=1, limit=4
    $region2: #{tpu_custom_call.1} parent=1 // loop_pre_header
      _
    $region3: #{tpu_custom_call.1} parent=1 // loop_header
      %s12 = sphi 0, %s16
      %p13 = scmp.ge.s32.totalorder %s12, 4
      %s22 = sphi 0, %s24
      %s25 = sphi 0, %s22
      %s26 = sphi 0, %s25
      %s42 = sphi 0, %s26
      %s46 = sphi 0, %s46
      %s48 = sphi 0, %s46
      %s49 = sphi 0, %s48
      %s63 = sphi 0, %s49
      %s67 = sphi 0, %s67
      %s69 = sphi 0, %s67
      %s70 = sphi 0, %s69
      %s84 = sphi 0, %s70
      %s90 = sphi 0, %s92
      %s93 = sphi 0, %s90
      %s94 = sphi 0, %s93
      %s110 = sphi 0, %s94
    $region4: #{tpu_custom_call.1} parent=1 // loop_header_branch
      %15 = sbr.rel (%p13) target = $region8
    $region5: #{tpu_custom_call.1} parent=1 // loop_body
      %s17 = ssub.s32 %s12, 1
      %s18 = ssub.s32 %s12, 2
      %s19 = sadd.s32 %s12, 1
      %s20 = ssub.s32 %s12, %s19
      %p21 = scmp.eq.s32.totalorder %s20, 0
      %s23 = sadd.s32 %s22, 1
      %s24 = scalar_select %p21, %s22, %s23
      %p27 = pneg %p21
      %p28 = scmp.eq.s32.totalorder %s12, 1
      %p29 = por %p27, %p28
      %p30 = scmp.ne.s32.totalorder %s22, %s25
      %p31 = scmp.eq.s32.totalorder %s12, 0
      %p32 = por %p30, %p31
      %p33 = scmp.ne.s32.totalorder %s22, %s25
      %p34 = scmp.eq.s32.totalorder %s17, 1
      %p35 = por %p33, %p34
      %p36 = scmp.ne.s32.totalorder %s25, %s26
      %p37 = scmp.eq.s32.totalorder %s17, 0
      %p38 = por %p36, %p37
      %p39 = scmp.ne.s32.totalorder %s25, %s26
      %p40 = scmp.eq.s32.totalorder %s18, 1
      %p41 = por %p39, %p40
      %p43 = scmp.ne.s32.totalorder %s26, %s42
      %p44 = scmp.eq.s32.totalorder %s18, 0
      %p45 = por %p43, %p44
      %s47 = sadd.s32 %s46, 1
      %p50 = scmp.eq.s32.totalorder %s12, 1
      %p51 = scmp.ne.s32.totalorder %s46, %s48
      %p52 = scmp.eq.s32.totalorder %s12, 0
      %p53 = por %p51, %p52
      %p54 = scmp.ne.s32.totalorder %s46, %s48
      %p55 = scmp.eq.s32.totalorder %s17, 1
      %p56 = por %p54, %p55
      %p57 = scmp.ne.s32.totalorder %s48, %s49
      %p58 = scmp.eq.s32.totalorder %s17, 0
      %p59 = por %p57, %p58
      %p60 = scmp.ne.s32.totalorder %s48, %s49
      %p61 = scmp.eq.s32.totalorder %s18, 1
      %p62 = por %p60, %p61
      %p64 = scmp.ne.s32.totalorder %s49, %s63
      %p65 = scmp.eq.s32.totalorder %s18, 0
      %p66 = por %p64, %p65
      %s68 = sadd.s32 %s67, 1
      %p71 = scmp.eq.s32.totalorder %s12, 1
      %p72 = scmp.ne.s32.totalorder %s67, %s69
      %p73 = scmp.eq.s32.totalorder %s12, 0
      %p74 = por %p72, %p73
      %p75 = scmp.ne.s32.totalorder %s67, %s69
      %p76 = scmp.eq.s32.totalorder %s17, 1
      %p77 = por %p75, %p76
      %p78 = scmp.ne.s32.totalorder %s69, %s70
      %p79 = scmp.eq.s32.totalorder %s17, 0
      %p80 = por %p78, %p79
      %p81 = scmp.ne.s32.totalorder %s69, %s70
      %p82 = scmp.eq.s32.totalorder %s18, 1
      %p83 = por %p81, %p82
      %p85 = scmp.ne.s32.totalorder %s70, %s84
      %p86 = scmp.eq.s32.totalorder %s18, 0
      %p87 = por %p85, %p86
      %s88 = ssub.s32 %s12, %s19
      %p89 = scmp.eq.s32.totalorder %s88, 0
      %s91 = sadd.s32 %s90, 1
      %s92 = scalar_select %p89, %s90, %s91
      %p95 = pneg %p89
      %p96 = scmp.eq.s32.totalorder %s12, 1
      %p97 = por %p95, %p96
      %p98 = scmp.ne.s32.totalorder %s90, %s93
      %p99 = scmp.eq.s32.totalorder %s12, 0
      %p100 = por %p98, %p99
      %p101 = scmp.ne.s32.totalorder %s90, %s93
      %p102 = scmp.eq.s32.totalorder %s17, 1
      %p103 = por %p101, %p102
      %p104 = scmp.ne.s32.totalorder %s93, %s94
      %p105 = scmp.eq.s32.totalorder %s17, 0
      %p106 = por %p104, %p105
      %p107 = scmp.ne.s32.totalorder %s93, %s94
      %p108 = scmp.eq.s32.totalorder %s18, 1
      %p109 = por %p107, %p108
      %p111 = scmp.ne.s32.totalorder %s94, %s110
      %p112 = scmp.eq.s32.totalorder %s18, 0
      %p113 = por %p111, %p112
      %p114 = scmp.le.s32.totalorder 1, %s12
      %p115 = scmp.lt.s32.totalorder %s12, 3
      %p116 = pnand %p114, %p115
      %p117 = pneg %p116
      // Predicated region
      $region9: #{tpu_custom_call.1} parent=5 // pred_check
        _
      $region10: #{tpu_custom_call.1} parent=5 // pred_check_branch
        %119 = sbr.rel (%p116) target = $region12
      $region11: #{tpu_custom_call.1} parent=5 // pred_region
        %s120 = ssub.s32 %s12, 1
        // Predicated region
        $region13: #{tpu_custom_call.1} parent=11 // pred_check
          %p121 = pneg %p59
        $region14: #{tpu_custom_call.1} parent=11 // pred_check_branch
          %123 = sbr.rel (%p121) target = $region16
        $region15: #{tpu_custom_call.1} parent=11 // pred_region
          _
        $region16: #{tpu_custom_call.1} parent=11 // pred_fallthru
          _
        // Predicated region
        $region17: #{tpu_custom_call.1} parent=11 // pred_check
          %p124 = pneg %p80
        $region18: #{tpu_custom_call.1} parent=11 // pred_check_branch
          %126 = sbr.rel (%p124) target = $region20
        $region19: #{tpu_custom_call.1} parent=11 // pred_region
          _
        $region20: #{tpu_custom_call.1} parent=11 // pred_fallthru
          _
      $region12: #{tpu_custom_call.1} parent=5 // pred_fallthru
        _
      %p127 = scmp.lt.s32.totalorder %s12, 2
      // Predicated region
      $region21: #{tpu_custom_call.1} parent=5 // pred_check
        %p128 = pneg %p127
      $region22: #{tpu_custom_call.1} parent=5 // pred_check_branch
        %130 = sbr.rel (%p128) target = $region24
      $region23: #{tpu_custom_call.1} parent=5 // pred_region
        // Predicated region
        $region25: #{tpu_custom_call.1} parent=23 // pred_check
          %p131 = pneg %p32
        $region26: #{tpu_custom_call.1} parent=23 // pred_check_branch
          %133 = sbr.rel (%p131) target = $region28
        $region27: #{tpu_custom_call.1} parent=23 // pred_region
          %p134 = scmp.lt.s32.totalorder %s12, 1
          %s135 = scalar_select %p134, %s12, 1
          %s136 = smul.addr %s135, 2
          %s137 = smul.addr %s136, 4
          %s138 = scalar_lea.vmem %s0, %s137
        $region28: #{tpu_custom_call.1} parent=23 // pred_fallthru
          _
      $region24: #{tpu_custom_call.1} parent=5 // pred_fallthru
        _
      %p139 = scmp.le.s32.totalorder 1, %s12
      %p140 = scmp.lt.s32.totalorder %s12, 3
      %p141 = pnand %p139, %p140
      %p142 = pneg %p141
      // Predicated region
      $region29: #{tpu_custom_call.1} parent=5 // pred_check
        _
      $region30: #{tpu_custom_call.1} parent=5 // pred_check_branch
        %144 = sbr.rel (%p141) target = $region32
      $region31: #{tpu_custom_call.1} parent=5 // pred_region
        %s145 = ssub.s32 %s12, 1
        %p146 = scmp.lt.s32.totalorder %s17, 1
        %s147 = scalar_select %p146, %s17, 1
        %s148 = smul.addr %s147, 2
        %s149 = smul.addr %s148, 4
        %s150 = scalar_lea.vmem %s0, %s149
        %p151 = pneg %p38
        %p152 = pneg %p35
        %p153 = pneg %p59
        %p154 = pneg %p56
        %p155 = pneg %p80
        %p156 = pneg %p77
        %p157 = pneg %p106
        %p158 = pneg %p103
        %s159 = sand.u32 %s93, 1
        %s160 = scalar_lea.sflag [#allocation3], %s159
        %s161 = sand.u32 %s93, 1
        %s162 = smul.addr %s161, 8
        %s163 = scalar_lea.vmem [#allocation2], %s162
        %p164 = scmp.lt.s32.totalorder %s17, 1
        %s165 = scalar_select %p164, %s17, 1
        %s166 = smul.addr %s165, 2
        %s167 = smul.addr %s166, 4
        %s168 = scalar_lea.vmem %s0, %s167
        %v169 = vlaneseq
        %v170 = vand.u32 %v169, 127
        %v171 = vadd.s32 %v170, 128
        %v172 = vcvt.s32.f32 %v170
        %v173 = vcvt.s32.f32 %v171
        %v174 = vadd.f32 %v172, 0.5
        %v175 = vadd.f32 %v173, 0.5
        %v176 = vmul.f32 %v174, 0.0625
        %v177 = vmul.f32 %v175, 0.0625
        %v178 = vfloor.f32 %v176
        %v179 = vfloor.f32 %v177
        %v180 = vcvt.f32.s32.to.zero.pseudo %v178
        %v181 = vcvt.f32.s32.to.zero.pseudo %v179
        %v182 = vmul.u32 %v180, 16
        %v183 = vmul.u32 %v181, 16
        %v184 = vsub.s32 %v170, %v182
        %v185 = vsub.s32 %v171, %v183
        %vm186 = vcmp.ge.s32.totalorder %v184, 1
        %vm187 = vcmp.ge.s32.totalorder %v185, 1
        %vm188 = vcmp.le.s32.totalorder %v184, 14
        %vm189 = vcmp.le.s32.totalorder %v185, 14
        %v190 = vld [vmem:[%s2] sm:$0xf]
        %192 = vset.pattern.permute.xlu0 0
        %193 = vperm.xlu0 %192, %v190
        %v194 = vpop.permute.xlu0 %193
        %v196 = vld [vmem:[%s168] sm:$0xff]
        %198 = vst [vmem:[#allocation1] ss:$2 sm:$0xff] %v196
        %v199 = vld.sshfl [vmem:[#allocation1] sm:$0xff pattern:$0x75316420]
        %v200 = vld.sshfl [vmem:[#allocation1 + $0x8] sm:$0xff pattern:$0x75316420]
        %202 = vrot.lane.b32.xlu0 0.0, 17
        %v203 = vpop.permute.xlu0 %202
        %204 = vrot.lane.b32.xlu0 %v199, 17
        %v205 = vpop.permute.xlu0 %204
        %206 = vrot.lane.b32.xlu0 %v200, 17
        %v207 = vpop.permute.xlu0 %206
        %vm208 = vcmask 138240
        %v209 = vsel %vm208, %v203, %v205
        %v210 = vsel %vm208, %v205, %v207
        %v213 = vsel %vm186, %v209, 0.0
        %v214 = vsel %vm187, %v210, 0.0
        %v215 = vld [vmem:[%s1] sm:$0xf]
        %vm216 = vcmask 31744
        %v218 = vsel %vm216, %v215, 0
        %vm220 = vcmask 1043456
        %v222 = vsel %vm220, %v213, 0
        %v225 = vsel %vm220, %v214, 0
        %227 = vmatpush.msra.mxu0 0.0
        %228 = vmatpush.msra.mxu0 0.0
        %229 = vmatpush.msra.mxu0 0.0
        %230 = vmatpush.msra.mxu0 0.0
        %231 = vmatpush.msra.mxu0 0.0
        %232 = vmatpush.msra.mxu0 0.0
        %233 = vmatpush.msra.mxu0 0.0
        %234 = vmatpush.msra.mxu0 0.0
        %235 = vmatpush.msra.mxu0 0.0
        %236 = vmatpush.msra.mxu0 0.0
        %237 = vmatpush.msra.mxu0 0.0
        %238 = vmatpush.msra.mxu0 0.0
        %239 = vmatpush.msra.mxu0 0.0
        %240 = vmatpush.msra.mxu0 0.0
        %241 = vmatpush.msra.mxu0 0.0
        %242 = vmatpush.msra.mxu0 %v222
        %243 = vmatmul.f32.gmra.mxu0 %v218
        %v244 = vpop.f32.mrf.mxu0
        %v245 = vadd.f32 0.0, %v244
        %246 = vdwg.mxu0
        %247 = vmatpush.msra.mxu0 0.0
        %248 = vmatpush.msra.mxu0 0.0
        %249 = vmatpush.msra.mxu0 0.0
        %250 = vmatpush.msra.mxu0 0.0
        %251 = vmatpush.msra.mxu0 0.0
        %252 = vmatpush.msra.mxu0 0.0
        %253 = vmatpush.msra.mxu0 0.0
        %254 = vmatpush.msra.mxu0 0.0
        %255 = vmatpush.msra.mxu0 0.0
        %256 = vmatpush.msra.mxu0 0.0
        %257 = vmatpush.msra.mxu0 0.0
        %258 = vmatpush.msra.mxu0 0.0
        %259 = vmatpush.msra.mxu0 0.0
        %260 = vmatpush.msra.mxu0 0.0
        %261 = vmatpush.msra.mxu0 0.0
        %262 = vmatpush.msra.mxu0 %v225
        %263 = vmatmul.f32.gmra.mxu0 %v218
        %v264 = vpop.f32.mrf.mxu0
        %v265 = vadd.f32 0.0, %v264
        %266 = vdwg.mxu0
        %v267 = vadd.f32 %v194, %v245
        %v268 = vadd.f32 %v194, %v265
        %s269 = scalar_lea.vmem %s1, 4
        %v270 = vld [vmem:[%s269] sm:$0xf]
        %271 = vrot.lane.b32.xlu0 0.0, 16
        %v272 = vpop.permute.xlu0 %271
        %273 = vrot.lane.b32.xlu0 %v199, 16
        %v274 = vpop.permute.xlu0 %273
        %275 = vrot.lane.b32.xlu0 %v200, 16
        %v276 = vpop.permute.xlu0 %275
        %vm277 = vcmask 130048
        %v278 = vsel %vm277, %v272, %v274
        %v279 = vsel %vm277, %v274, %v276
        %v281 = vsel %vm216, %v270, 0
        %v283 = vsel %vm220, %v278, 0
        %v285 = vsel %vm220, %v279, 0
        %287 = vmatpush.msra.mxu0 0.0
        %288 = vmatpush.msra.mxu0 0.0
        %289 = vmatpush.msra.mxu0 0.0
        %290 = vmatpush.msra.mxu0 0.0
        %291 = vmatpush.msra.mxu0 0.0
        %292 = vmatpush.msra.mxu0 0.0
        %293 = vmatpush.msra.mxu0 0.0
        %294 = vmatpush.msra.mxu0 0.0
        %295 = vmatpush.msra.mxu0 0.0
        %296 = vmatpush.msra.mxu0 0.0
        %297 = vmatpush.msra.mxu0 0.0
        %298 = vmatpush.msra.mxu0 0.0
        %299 = vmatpush.msra.mxu0 0.0
        %300 = vmatpush.msra.mxu0 0.0
        %301 = vmatpush.msra.mxu0 0.0
        %302 = vmatpush.msra.mxu0 %v283
        %303 = vmatmul.f32.gmra.mxu0 %v281
        %v304 = vpop.f32.mrf.mxu0
        %v305 = vadd.f32 0.0, %v304
        %306 = vdwg.mxu0
        %307 = vmatpush.msra.mxu0 0.0
        %308 = vmatpush.msra.mxu0 0.0
        %309 = vmatpush.msra.mxu0 0.0
        %310 = vmatpush.msra.mxu0 0.0
        %311 = vmatpush.msra.mxu0 0.0
        %312 = vmatpush.msra.mxu0 0.0
        %313 = vmatpush.msra.mxu0 0.0
        %314 = vmatpush.msra.mxu0 0.0
        %315 = vmatpush.msra.mxu0 0.0
        %316 = vmatpush.msra.mxu0 0.0
        %317 = vmatpush.msra.mxu0 0.0
        %318 = vmatpush.msra.mxu0 0.0
        %319 = vmatpush.msra.mxu0 0.0
        %320 = vmatpush.msra.mxu0 0.0
        %321 = vmatpush.msra.mxu0 0.0
        %322 = vmatpush.msra.mxu0 %v285
        %323 = vmatmul.f32.gmra.mxu0 %v281
        %v324 = vpop.f32.mrf.mxu0
        %v325 = vadd.f32 0.0, %v324
        %326 = vdwg.mxu0
        %v327 = vadd.f32 %v267, %v305
        %v328 = vadd.f32 %v268, %v325
        %329 = vrot.lane.b32.xlu0 0.0, 15
        %v330 = vpop.permute.xlu0 %329
        %331 = vrot.lane.b32.xlu0 %v199, 15
        %v332 = vpop.permute.xlu0 %331
        %333 = vrot.lane.b32.xlu0 %v200, 15
        %v334 = vpop.permute.xlu0 %333
        %vm335 = vcmask 121856
        %v336 = vsel %vm335, %v330, %v332
        %v337 = vsel %vm335, %v332, %v334
        %v340 = vsel %vm188, %v336, 0.0
        %v341 = vsel %vm189, %v337, 0.0
        %s342 = scalar_lea.vmem %s1, 8
        %v343 = vld [vmem:[%s342] sm:$0xf]
        %v345 = vsel %vm216, %v343, 0
        %v348 = vsel %vm220, %v340, 0
        %v351 = vsel %vm220, %v341, 0
        %353 = vmatpush.msra.mxu0 0.0
        %354 = vmatpush.msra.mxu0 0.0
        %355 = vmatpush.msra.mxu0 0.0
        %356 = vmatpush.msra.mxu0 0.0
        %357 = vmatpush.msra.mxu0 0.0
        %358 = vmatpush.msra.mxu0 0.0
        %359 = vmatpush.msra.mxu0 0.0
        %360 = vmatpush.msra.mxu0 0.0
        %361 = vmatpush.msra.mxu0 0.0
        %362 = vmatpush.msra.mxu0 0.0
        %363 = vmatpush.msra.mxu0 0.0
        %364 = vmatpush.msra.mxu0 0.0
        %365 = vmatpush.msra.mxu0 0.0
        %366 = vmatpush.msra.mxu0 0.0
        %367 = vmatpush.msra.mxu0 0.0
        %368 = vmatpush.msra.mxu0 %v348
        %369 = vmatmul.f32.gmra.mxu0 %v345
        %v370 = vpop.f32.mrf.mxu0
        %v371 = vadd.f32 0.0, %v370
        %372 = vdwg.mxu0
        %373 = vmatpush.msra.mxu0 0.0
        %374 = vmatpush.msra.mxu0 0.0
        %375 = vmatpush.msra.mxu0 0.0
        %376 = vmatpush.msra.mxu0 0.0
        %377 = vmatpush.msra.mxu0 0.0
        %378 = vmatpush.msra.mxu0 0.0
        %379 = vmatpush.msra.mxu0 0.0
        %380 = vmatpush.msra.mxu0 0.0
        %381 = vmatpush.msra.mxu0 0.0
        %382 = vmatpush.msra.mxu0 0.0
        %383 = vmatpush.msra.mxu0 0.0
        %384 = vmatpush.msra.mxu0 0.0
        %385 = vmatpush.msra.mxu0 0.0
        %386 = vmatpush.msra.mxu0 0.0
        %387 = vmatpush.msra.mxu0 0.0
        %388 = vmatpush.msra.mxu0 %v351
        %389 = vmatmul.f32.gmra.mxu0 %v345
        %v390 = vpop.f32.mrf.mxu0
        %v391 = vadd.f32 0.0, %v390
        %392 = vdwg.mxu0
        %v393 = vadd.f32 %v327, %v371
        %v394 = vadd.f32 %v328, %v391
        %395 = vrot.lane.b32.xlu0 0.0, 1
        %v396 = vpop.permute.xlu0 %395
        %397 = vrot.lane.b32.xlu0 %v199, 1
        %v398 = vpop.permute.xlu0 %397
        %399 = vrot.lane.b32.xlu0 %v200, 1
        %v400 = vpop.permute.xlu0 %399
        %vm401 = vcmask 7168
        %v402 = vsel %vm401, %v396, %v398
        %v403 = vsel %vm401, %v398, %v400
        %v406 = vsel %vm186, %v402, 0.0
        %v407 = vsel %vm187, %v403, 0.0
        %s408 = scalar_lea.vmem %s1, 12
        %v409 = vld [vmem:[%s408] sm:$0xf]
        %v411 = vsel %vm216, %v409, 0
        %v414 = vsel %vm220, %v406, 0
        %v417 = vsel %vm220, %v407, 0
        %419 = vmatpush.msra.mxu0 0.0
        %420 = vmatpush.msra.mxu0 0.0
        %421 = vmatpush.msra.mxu0 0.0
        %422 = vmatpush.msra.mxu0 0.0
        %423 = vmatpush.msra.mxu0 0.0
        %424 = vmatpush.msra.mxu0 0.0
        %425 = vmatpush.msra.mxu0 0.0
        %426 = vmatpush.msra.mxu0 0.0
        %427 = vmatpush.msra.mxu0 0.0
        %428 = vmatpush.msra.mxu0 0.0
        %429 = vmatpush.msra.mxu0 0.0
        %430 = vmatpush.msra.mxu0 0.0
        %431 = vmatpush.msra.mxu0 0.0
        %432 = vmatpush.msra.mxu0 0.0
        %433 = vmatpush.msra.mxu0 0.0
        %434 = vmatpush.msra.mxu0 %v414
        %435 = vmatmul.f32.gmra.mxu0 %v411
        %v436 = vpop.f32.mrf.mxu0
        %v437 = vadd.f32 0.0, %v436
        %438 = vdwg.mxu0
        %439 = vmatpush.msra.mxu0 0.0
        %440 = vmatpush.msra.mxu0 0.0
        %441 = vmatpush.msra.mxu0 0.0
        %442 = vmatpush.msra.mxu0 0.0
        %443 = vmatpush.msra.mxu0 0.0
        %444 = vmatpush.msra.mxu0 0.0
        %445 = vmatpush.msra.mxu0 0.0
        %446 = vmatpush.msra.mxu0 0.0
        %447 = vmatpush.msra.mxu0 0.0
        %448 = vmatpush.msra.mxu0 0.0
        %449 = vmatpush.msra.mxu0 0.0
        %450 = vmatpush.msra.mxu0 0.0
        %451 = vmatpush.msra.mxu0 0.0
        %452 = vmatpush.msra.mxu0 0.0
        %453 = vmatpush.msra.mxu0 0.0
        %454 = vmatpush.msra.mxu0 %v417
        %455 = vmatmul.f32.gmra.mxu0 %v411
        %v456 = vpop.f32.mrf.mxu0
        %v457 = vadd.f32 0.0, %v456
        %458 = vdwg.mxu0
        %v459 = vadd.f32 %v393, %v437
        %v460 = vadd.f32 %v394, %v457
        %s461 = scalar_lea.vmem %s1, 16
        %v462 = vld [vmem:[%s461] sm:$0xf]
        %463 = vst [vmem:[#allocation1] ss:$2 sm:$0xff] %v196
        %v464 = vld.sshfl [vmem:[#allocation1] sm:$0xff pattern:$0x75316420]
        %v465 = vld.sshfl [vmem:[#allocation1 + $0x8] sm:$0xff pattern:$0x75316420]
        %v467 = vsel %vm216, %v462, 0
        %v469 = vsel %vm220, %v464, 0
        %v471 = vsel %vm220, %v465, 0
        %473 = vmatpush.msra.mxu0 0.0
        %474 = vmatpush.msra.mxu0 0.0
        %475 = vmatpush.msra.mxu0 0.0
        %476 = vmatpush.msra.mxu0 0.0
        %477 = vmatpush.msra.mxu0 0.0
        %478 = vmatpush.msra.mxu0 0.0
        %479 = vmatpush.msra.mxu0 0.0
        %480 = vmatpush.msra.mxu0 0.0
        %481 = vmatpush.msra.mxu0 0.0
        %482 = vmatpush.msra.mxu0 0.0
        %483 = vmatpush.msra.mxu0 0.0
        %484 = vmatpush.msra.mxu0 0.0
        %485 = vmatpush.msra.mxu0 0.0
        %486 = vmatpush.msra.mxu0 0.0
        %487 = vmatpush.msra.mxu0 0.0
        %488 = vmatpush.msra.mxu0 %v469
        %489 = vmatmul.f32.gmra.mxu0 %v467
        %v490 = vpop.f32.mrf.mxu0
        %v491 = vadd.f32 0.0, %v490
        %492 = vdwg.mxu0
        %493 = vmatpush.msra.mxu0 0.0
        %494 = vmatpush.msra.mxu0 0.0
        %495 = vmatpush.msra.mxu0 0.0
        %496 = vmatpush.msra.mxu0 0.0
        %497 = vmatpush.msra.mxu0 0.0
        %498 = vmatpush.msra.mxu0 0.0
        %499 = vmatpush.msra.mxu0 0.0
        %500 = vmatpush.msra.mxu0 0.0
        %501 = vmatpush.msra.mxu0 0.0
        %502 = vmatpush.msra.mxu0 0.0
        %503 = vmatpush.msra.mxu0 0.0
        %504 = vmatpush.msra.mxu0 0.0
        %505 = vmatpush.msra.mxu0 0.0
        %506 = vmatpush.msra.mxu0 0.0
        %507 = vmatpush.msra.mxu0 0.0
        %508 = vmatpush.msra.mxu0 %v471
        %509 = vmatmul.f32.gmra.mxu0 %v467
        %v510 = vpop.f32.mrf.mxu0
        %v511 = vadd.f32 0.0, %v510
        %512 = vdwg.mxu0
        %v513 = vadd.f32 %v459, %v491
        %v514 = vadd.f32 %v460, %v511
        %515 = vrot.lane.b32.xlu0 %v199, 127
        %v516 = vpop.permute.xlu0 %515
        %517 = vrot.lane.b32.xlu0 %v200, 127
        %v518 = vpop.permute.xlu0 %517
        %519 = vrot.lane.b32.xlu0 0.0, 127
        %v520 = vpop.permute.xlu0 %519
        %vm521 = vcmask 1039360
        %v522 = vsel %vm521, %v516, %v518
        %v523 = vsel %vm521, %v518, %v520
        %v526 = vsel %vm188, %v522, 0.0
        %v527 = vsel %vm189, %v523, 0.0
        %s528 = scalar_lea.vmem %s1, 20
        %v529 = vld [vmem:[%s528] sm:$0xf]
        %v531 = vsel %vm216, %v529, 0
        %v534 = vsel %vm220, %v526, 0
        %v537 = vsel %vm220, %v527, 0
        %539 = vmatpush.msra.mxu0 0.0
        %540 = vmatpush.msra.mxu0 0.0
        %541 = vmatpush.msra.mxu0 0.0
        %542 = vmatpush.msra.mxu0 0.0
        %543 = vmatpush.msra.mxu0 0.0
        %544 = vmatpush.msra.mxu0 0.0
        %545 = vmatpush.msra.mxu0 0.0
        %546 = vmatpush.msra.mxu0 0.0
        %547 = vmatpush.msra.mxu0 0.0
        %548 = vmatpush.msra.mxu0 0.0
        %549 = vmatpush.msra.mxu0 0.0
        %550 = vmatpush.msra.mxu0 0.0
        %551 = vmatpush.msra.mxu0 0.0
        %552 = vmatpush.msra.mxu0 0.0
        %553 = vmatpush.msra.mxu0 0.0
        %554 = vmatpush.msra.mxu0 %v534
        %555 = vmatmul.f32.gmra.mxu0 %v531
        %v556 = vpop.f32.mrf.mxu0
        %v557 = vadd.f32 0.0, %v556
        %558 = vdwg.mxu0
        %559 = vmatpush.msra.mxu0 0.0
        %560 = vmatpush.msra.mxu0 0.0
        %561 = vmatpush.msra.mxu0 0.0
        %562 = vmatpush.msra.mxu0 0.0
        %563 = vmatpush.msra.mxu0 0.0
        %564 = vmatpush.msra.mxu0 0.0
        %565 = vmatpush.msra.mxu0 0.0
        %566 = vmatpush.msra.mxu0 0.0
        %567 = vmatpush.msra.mxu0 0.0
        %568 = vmatpush.msra.mxu0 0.0
        %569 = vmatpush.msra.mxu0 0.0
        %570 = vmatpush.msra.mxu0 0.0
        %571 = vmatpush.msra.mxu0 0.0
        %572 = vmatpush.msra.mxu0 0.0
        %573 = vmatpush.msra.mxu0 0.0
        %574 = vmatpush.msra.mxu0 %v537
        %575 = vmatmul.f32.gmra.mxu0 %v531
        %v576 = vpop.f32.mrf.mxu0
        %v577 = vadd.f32 0.0, %v576
        %578 = vdwg.mxu0
        %v579 = vadd.f32 %v513, %v557
        %v580 = vadd.f32 %v514, %v577
        %581 = vrot.lane.b32.xlu0 %v199, 113
        %v582 = vpop.permute.xlu0 %581
        %583 = vrot.lane.b32.xlu0 %v200, 113
        %v584 = vpop.permute.xlu0 %583
        %585 = vrot.lane.b32.xlu0 0.0, 113
        %v586 = vpop.permute.xlu0 %585
        %vm587 = vcmask 924672
        %v588 = vsel %vm587, %v582, %v584
        %v589 = vsel %vm587, %v584, %v586
        %v592 = vsel %vm186, %v588, 0.0
        %v593 = vsel %vm187, %v589, 0.0
        %s594 = scalar_lea.vmem %s1, 24
        %v595 = vld [vmem:[%s594] sm:$0xf]
        %v597 = vsel %vm216, %v595, 0
        %v600 = vsel %vm220, %v592, 0
        %v603 = vsel %vm220, %v593, 0
        %605 = vmatpush.msra.mxu0 0.0
        %606 = vmatpush.msra.mxu0 0.0
        %607 = vmatpush.msra.mxu0 0.0
        %608 = vmatpush.msra.mxu0 0.0
        %609 = vmatpush.msra.mxu0 0.0
        %610 = vmatpush.msra.mxu0 0.0
        %611 = vmatpush.msra.mxu0 0.0
        %612 = vmatpush.msra.mxu0 0.0
        %613 = vmatpush.msra.mxu0 0.0
        %614 = vmatpush.msra.mxu0 0.0
        %615 = vmatpush.msra.mxu0 0.0
        %616 = vmatpush.msra.mxu0 0.0
        %617 = vmatpush.msra.mxu0 0.0
        %618 = vmatpush.msra.mxu0 0.0
        %619 = vmatpush.msra.mxu0 0.0
        %620 = vmatpush.msra.mxu0 %v600
        %621 = vmatmul.f32.gmra.mxu0 %v597
        %v622 = vpop.f32.mrf.mxu0
        %v623 = vadd.f32 0.0, %v622
        %624 = vdwg.mxu0
        %625 = vmatpush.msra.mxu0 0.0
        %626 = vmatpush.msra.mxu0 0.0
        %627 = vmatpush.msra.mxu0 0.0
        %628 = vmatpush.msra.mxu0 0.0
        %629 = vmatpush.msra.mxu0 0.0
        %630 = vmatpush.msra.mxu0 0.0
        %631 = vmatpush.msra.mxu0 0.0
        %632 = vmatpush.msra.mxu0 0.0
        %633 = vmatpush.msra.mxu0 0.0
        %634 = vmatpush.msra.mxu0 0.0
        %635 = vmatpush.msra.mxu0 0.0
        %636 = vmatpush.msra.mxu0 0.0
        %637 = vmatpush.msra.mxu0 0.0
        %638 = vmatpush.msra.mxu0 0.0
        %639 = vmatpush.msra.mxu0 0.0
        %640 = vmatpush.msra.mxu0 %v603
        %641 = vmatmul.f32.gmra.mxu0 %v597
        %v642 = vpop.f32.mrf.mxu0
        %v643 = vadd.f32 0.0, %v642
        %644 = vdwg.mxu0
        %v645 = vadd.f32 %v579, %v623
        %v646 = vadd.f32 %v580, %v643
        %s647 = scalar_lea.vmem %s1, 28
        %v648 = vld [vmem:[%s647] sm:$0xf]
        %649 = vrot.lane.b32.xlu0 %v199, 112
        %v650 = vpop.permute.xlu0 %649
        %651 = vrot.lane.b32.xlu0 %v200, 112
        %v652 = vpop.permute.xlu0 %651
        %653 = vrot.lane.b32.xlu0 0.0, 112
        %v654 = vpop.permute.xlu0 %653
        %vm655 = vcmask 916480
        %v656 = vsel %vm655, %v650, %v652
        %v657 = vsel %vm655, %v652, %v654
        %v659 = vsel %vm216, %v648, 0
        %v661 = vsel %vm220, %v656, 0
        %v663 = vsel %vm220, %v657, 0
        %665 = vmatpush.msra.mxu0 0.0
        %666 = vmatpush.msra.mxu0 0.0
        %667 = vmatpush.msra.mxu0 0.0
        %668 = vmatpush.msra.mxu0 0.0
        %669 = vmatpush.msra.mxu0 0.0
        %670 = vmatpush.msra.mxu0 0.0
        %671 = vmatpush.msra.mxu0 0.0
        %672 = vmatpush.msra.mxu0 0.0
        %673 = vmatpush.msra.mxu0 0.0
        %674 = vmatpush.msra.mxu0 0.0
        %675 = vmatpush.msra.mxu0 0.0
        %676 = vmatpush.msra.mxu0 0.0
        %677 = vmatpush.msra.mxu0 0.0
        %678 = vmatpush.msra.mxu0 0.0
        %679 = vmatpush.msra.mxu0 0.0
        %680 = vmatpush.msra.mxu0 %v661
        %681 = vmatmul.f32.gmra.mxu0 %v659
        %v682 = vpop.f32.mrf.mxu0
        %v683 = vadd.f32 0.0, %v682
        %684 = vdwg.mxu0
        %685 = vmatpush.msra.mxu0 0.0
        %686 = vmatpush.msra.mxu0 0.0
        %687 = vmatpush.msra.mxu0 0.0
        %688 = vmatpush.msra.mxu0 0.0
        %689 = vmatpush.msra.mxu0 0.0
        %690 = vmatpush.msra.mxu0 0.0
        %691 = vmatpush.msra.mxu0 0.0
        %692 = vmatpush.msra.mxu0 0.0
        %693 = vmatpush.msra.mxu0 0.0
        %694 = vmatpush.msra.mxu0 0.0
        %695 = vmatpush.msra.mxu0 0.0
        %696 = vmatpush.msra.mxu0 0.0
        %697 = vmatpush.msra.mxu0 0.0
        %698 = vmatpush.msra.mxu0 0.0
        %699 = vmatpush.msra.mxu0 0.0
        %700 = vmatpush.msra.mxu0 %v663
        %701 = vmatmul.f32.gmra.mxu0 %v659
        %v702 = vpop.f32.mrf.mxu0
        %v703 = vadd.f32 0.0, %v702
        %704 = vdwg.mxu0
        %v705 = vadd.f32 %v645, %v683
        %v706 = vadd.f32 %v646, %v703
        %707 = vrot.lane.b32.xlu0 %v199, 111
        %v708 = vpop.permute.xlu0 %707
        %709 = vrot.lane.b32.xlu0 %v200, 111
        %v710 = vpop.permute.xlu0 %709
        %711 = vrot.lane.b32.xlu0 0.0, 111
        %v712 = vpop.permute.xlu0 %711
        %vm713 = vcmask 908288
        %v714 = vsel %vm713, %v708, %v710
        %v715 = vsel %vm713, %v710, %v712
        %v718 = vsel %vm188, %v714, 0.0
        %v719 = vsel %vm189, %v715, 0.0
        %s720 = scalar_lea.vmem %s1, 32
        %v721 = vld [vmem:[%s720] sm:$0xf]
        %v723 = vsel %vm216, %v721, 0
        %v726 = vsel %vm220, %v718, 0
        %v729 = vsel %vm220, %v719, 0
        %731 = vmatpush.msra.mxu0 0.0
        %732 = vmatpush.msra.mxu0 0.0
        %733 = vmatpush.msra.mxu0 0.0
        %734 = vmatpush.msra.mxu0 0.0
        %735 = vmatpush.msra.mxu0 0.0
        %736 = vmatpush.msra.mxu0 0.0
        %737 = vmatpush.msra.mxu0 0.0
        %738 = vmatpush.msra.mxu0 0.0
        %739 = vmatpush.msra.mxu0 0.0
        %740 = vmatpush.msra.mxu0 0.0
        %741 = vmatpush.msra.mxu0 0.0
        %742 = vmatpush.msra.mxu0 0.0
        %743 = vmatpush.msra.mxu0 0.0
        %744 = vmatpush.msra.mxu0 0.0
        %745 = vmatpush.msra.mxu0 0.0
        %746 = vmatpush.msra.mxu0 %v726
        %747 = vmatmul.f32.gmra.mxu0 %v723
        %v748 = vpop.f32.mrf.mxu0
        %v749 = vadd.f32 0.0, %v748
        %750 = vdwg.mxu0
        %751 = vmatpush.msra.mxu0 0.0
        %752 = vmatpush.msra.mxu0 0.0
        %753 = vmatpush.msra.mxu0 0.0
        %754 = vmatpush.msra.mxu0 0.0
        %755 = vmatpush.msra.mxu0 0.0
        %756 = vmatpush.msra.mxu0 0.0
        %757 = vmatpush.msra.mxu0 0.0
        %758 = vmatpush.msra.mxu0 0.0
        %759 = vmatpush.msra.mxu0 0.0
        %760 = vmatpush.msra.mxu0 0.0
        %761 = vmatpush.msra.mxu0 0.0
        %762 = vmatpush.msra.mxu0 0.0
        %763 = vmatpush.msra.mxu0 0.0
        %764 = vmatpush.msra.mxu0 0.0
        %765 = vmatpush.msra.mxu0 0.0
        %766 = vmatpush.msra.mxu0 %v729
        %767 = vmatmul.f32.gmra.mxu0 %v723
        %v768 = vpop.f32.mrf.mxu0
        %v769 = vadd.f32 0.0, %v768
        %770 = vdwg.mxu0
        %v771 = vadd.f32 %v705, %v749
        %v772 = vadd.f32 %v706, %v769
        %v773 = vmax.f32 %v771, 0.0
        %v774 = vmax.f32 %v772, 0.0
        %v777 = vrot.slane %v774, 4
        %v778 = vsel %vm220, %v773, %v777
        %v780 = vadd.f32 %v196, %v778
        %781 = vst [vmem:[%s163] sm:$0xff] %v780
        %s782 = sand.u32 %s93, 1
        %s783 = scalar_lea.sflag [#allocation3], %s782
        %s784 = sand.u32 %s93, 1
        %s785 = smul.addr %s784, 8
        %s786 = scalar_lea.vmem [#allocation2], %s785
        // Predicated region
        $region33: #{tpu_custom_call.1} parent=31 // pred_check
          %p787 = pneg %p103
        $region34: #{tpu_custom_call.1} parent=31 // pred_check_branch
          %789 = sbr.rel (%p787) target = $region36
        $region35: #{tpu_custom_call.1} parent=31 // pred_region
          %791 = vsyncadd %s783, 0
          %s792 = smul.addr %s17, 2
          %s793 = smul.addr %s792, 4
          %s794 = scalar_lea.hbm %s3, %s793
          %s796 = sshll.u32 %s786, 4
          %s797 = int_to_ptr.vmem [resolvable:$true] %s796
          %s798 = sshll.u32 %s794, 4
          %s799 = int_to_ptr.hbm [resolvable:$true] %s798
          %801 = dma.vmem_to_hbm [thread:$0]  %s797, 128, %s799, %s783
        $region36: #{tpu_custom_call.1} parent=31 // pred_fallthru
          _
      $region32: #{tpu_custom_call.1} parent=5 // pred_fallthru
        _
      %p802 = scmp.le.s32.totalorder 2, %s12
      // Predicated region
      $region37: #{tpu_custom_call.1} parent=5 // pred_check
        %p803 = pneg %p802
      $region38: #{tpu_custom_call.1} parent=5 // pred_check_branch
        %805 = sbr.rel (%p803) target = $region40
      $region39: #{tpu_custom_call.1} parent=5 // pred_region
        %s806 = ssub.s32 %s12, 2
        // Predicated region
        $region41: #{tpu_custom_call.1} parent=39 // pred_check
          %p807 = pneg %p109
        $region42: #{tpu_custom_call.1} parent=39 // pred_check_branch
          %809 = sbr.rel (%p807) target = $region44
        $region43: #{tpu_custom_call.1} parent=39 // pred_region
          %s810 = sand.u32 %s94, 1
          %s811 = scalar_lea.sflag [#allocation3], %s810
          %s812 = sand.u32 %s94, 1
          %s813 = smul.addr %s812, 8
          %s814 = scalar_lea.vmem [#allocation2], %s813
          %816 = dma.done %s811, 128
        $region44: #{tpu_custom_call.1} parent=39 // pred_fallthru
          _
      $region40: #{tpu_custom_call.1} parent=5 // pred_fallthru
        _
    $region6: #{tpu_custom_call.1} parent=1 // loop_footer
      %s16 = sadd.s32 1, %s12
    $region7: #{tpu_custom_call.1} parent=1 // loop_footer_branch
      %11 = sbr.rel target = $region3
    $region8: #{tpu_custom_call.1} parent=1 // loop_exit
      _
    %817 = vsyncpa [#allocation3], 1
    %s818 = scalar_lea.sflag [#allocation3], 1
    %819 = vsyncpa %s818, 1

</llo_original>
